<compile_context>
chip_gen: v6e
topology: v6e:2x2x1
jax: 0.10.0
libtpu: 0.0.40
codegen_flags: <defaults>
</compile_context>

<pallas_src>
import math
import functools

import jax
import jax.numpy as jnp
from jax import lax
from jax.experimental import pallas as pl
from jax.experimental.pallas import tpu as pltpu


# ----------------------------------------------------------------------------
# Pallas kernel: one SCD_cell forward step (batch-first layout inside)
# ----------------------------------------------------------------------------
def _scd_cell_kernel(x_ref, c_ref, z_ref, zb_ref, w_ref, b_ref,
                     hc_ref, znew_ref,
                     *, hidden_size, top_size, a, last_layer):
    """x_ref : (B, K)      un-scaled concat of [h | h_top | h_bottom] (batch-first)
       c_ref : (B, H)      cell state
       z_ref, zb_ref : (B, 1)   boundary gates z, z_bottom
       w_ref : (K, 4H+1)   stacked [U_11; U_21; W_01]^T
       b_ref : (1, 4H+1)   bias row
       hc_ref: (B, 2H)     output [h_new | c_new]
       znew_ref: (B, 1)    output z_new."""
    H = hidden_size
    x_raw = x_ref[...]                       # (B, K)
    c = c_ref[...]                           # (B, H)
    z = z_ref[...]                           # (B, 1)
    zb = zb_ref[...]                         # (B, 1)
    h = x_raw[:, 0:H]                        # recurrent h is the first block of x

    # Per-batch gating commutes with the matmul -> scale the LHS blocks and do
    # ONE fused MXU matmul instead of three.  Block selection via lane iota
    # (whole-vreg VPU selects, no lane shuffles, no in-kernel concat).
    K = x_raw.shape[1]
    col = lax.broadcasted_iota(jnp.int32, (1, K), 1)
    if last_layer:
        scale = jnp.where(col < H, 1.0 - z, zb)
    else:
        scale = jnp.where(col < H, 1.0 - z,
                          jnp.where(col < H + top_size, z, zb))
    x = x_raw * scale                        # (B, K)

    f_s = jnp.dot(x, w_ref[...], preferred_element_type=jnp.float32) + b_ref[...]

    # [f | i | o] share one contiguous sigmoid pass; g is one tanh; z_hat one lane.
    sfio = jax.nn.sigmoid(f_s[:, 0:3 * H])
    f = sfio[:, 0:H]
    i = sfio[:, H:2 * H]
    o = sfio[:, 2 * H:3 * H]
    g = jnp.tanh(f_s[:, 3 * H:4 * H])
    z_hat = jnp.clip((a * f_s[:, 4 * H:4 * H + 1] + 1.0) * 0.5, 0.0, 1.0)

    copy = (1.0 - z) * (1.0 - zb)            # (B, 1) broadcast over H lanes
    upd = (1.0 - z) * zb
    ig = i * g
    c_new = z * ig + copy * c + upd * (f * c + ig)
    oth = o * jnp.tanh(c_new)
    h_new = z * oth + copy * h + upd * oth

    hc_ref[:, 0:H] = h_new
    hc_ref[:, H:2 * H] = c_new
    znew_ref[...] = z_hat


# ----------------------------------------------------------------------------
# Wrapper: same interface / layout as the PyTorch forward
#   inputs  c,h : (H,B)   h_bottom : (bottom,B)   h_top : (top,B)   z,zb : (1,B)
#   returns h_new (H,B), c_new (H,B), z_new (1,B)
# ----------------------------------------------------------------------------
@functools.partial(jax.jit,
                   static_argnames=("hidden_size", "top_size", "a", "last_layer"))
def scd_cell_forward(fused_params, c, h_bottom, h, h_top, z, z_bottom,
                     *, hidden_size, top_size, a, last_layer):
    W, b = fused_params                      # (K, 4H+1), (1, 4H+1)
    H = hidden_size
    B = c.shape[1]
    K, N = W.shape

    # Layout plumbing only (no compute hoisted out of the kernel).
    if last_layer:
        x_raw = jnp.concatenate([h.T, h_bottom.T], axis=1)          # (B, H+bot)
    else:
        x_raw = jnp.concatenate([h.T, h_top.T, h_bottom.T], axis=1)  # (B, H+top+bot)

    kernel = functools.partial(_scd_cell_kernel, hidden_size=H,
                               top_size=top_size, a=a, last_layer=last_layer)
    vmem = pl.BlockSpec(memory_space=pltpu.MemorySpace.VMEM)

    flops = 2 * B * K * N + 10 * B * H
    transcendentals = 5 * B * H
    bytes_accessed = 4 * (B * K + B * H + 2 * B + K * N + N + B * (2 * H + 1))

    hc, z_new = pl.pallas_call(
        kernel,
        out_shape=(jax.ShapeDtypeStruct((B, 2 * H), jnp.float32),
                   jax.ShapeDtypeStruct((B, 1), jnp.float32)),
        in_specs=[vmem] * 6,
        out_specs=(vmem, vmem),
        cost_estimate=pl.CostEstimate(flops=flops,
                                      transcendentals=transcendentals,
                                      bytes_accessed=bytes_accessed),
        compiler_params=pltpu.CompilerParams(vmem_limit_bytes=32 * 1024 * 1024),
    )(x_raw, c.T, z.T, z_bottom.T, W, b)

    return hc[:, 0:H].T, hc[:, H:2 * H].T, z_new.T


# ----------------------------------------------------------------------------
# Parameters (PyTorch reset_parameters: uniform(-1/sqrt(H), 1/sqrt(H)))
# ----------------------------------------------------------------------------
def make_scd_params(key, bottom_size, hidden_size, top_size, last_layer):
    stdv = 1.0 / math.sqrt(hidden_size)
    n = 4 * hidden_size + 1
    key, k1, k2, k3, k4 = jax.random.split(key, 5)
    U_11 = jax.random.uniform(k1, (n, hidden_size), jnp.float32, -stdv, stdv)
    W_01 = jax.random.uniform(k3, (n, bottom_size), jnp.float32, -stdv, stdv)
    bias = jax.random.uniform(k4, (n,), jnp.float32, -stdv, stdv)
    if last_layer:
        U_21 = None
        W_big = jnp.concatenate([U_11, W_01], axis=1).T               # (H+bot, 4H+1)
    else:
        U_21 = jax.random.uniform(k2, (n, top_size), jnp.float32, -stdv, stdv)
        W_big = jnp.concatenate([U_11, U_21, W_01], axis=1).T         # (H+top+bot, 4H+1)
    raw = (U_11, U_21, W_01, bias)
    fused = (W_big, bias.reshape(1, n))
    return raw, fused, key


# ----------------------------------------------------------------------------
# Pure-JAX reference (direct translation of the PyTorch forward)
# ----------------------------------------------------------------------------
def _ref_scd_cell(raw_params, c, h_bottom, h, h_top, z, z_bottom,
                  *, hidden_size, a, last_layer):
    U_11, U_21, W_01, bias = raw_params
    H = hidden_size
    s_recur = (1.0 - z) * (U_11 @ h)
    if last_layer:
        s_topdown = jnp.zeros_like(s_recur)
    else:
        s_topdown = z * (U_21 @ h_top)
    s_bottomup = z_bottom * (W_01 @ h_bottom)
    f_s = s_recur + s_topdown + s_bottomup + bias[:, None]
    f = jax.nn.sigmoid(f_s[0:H, :])
    i = jax.nn.sigmoid(f_s[H:2 * H, :])
    o = jax.nn.sigmoid(f_s[2 * H:3 * H, :])
    g = jnp.tanh(f_s[3 * H:4 * H, :])
    z_hat = jnp.clip((a * f_s[4 * H:4 * H + 1, :] + 1.0) * 0.5, 0.0, 1.0)
    c_new = (z * (i * g) + (1 - z) * (1 - z_bottom) * c
             + (1 - z) * z_bottom * (f * c + i * g))
    th = jnp.tanh(c_new)
    h_new = (z * o * th + (1 - z) * (1 - z_bottom) * h
             + (1 - z) * z_bottom * o * th)
    return h_new, c_new, z_hat


# ----------------------------------------------------------------------------
if __name__ == "__main__":
    B = 2
    BOTTOM, HID, TOP = 16, 32, 32
    A = 1.0

    key = jax.random.PRNGKey(0)
    key, kc, kh, khb, kht, kz, kzb = jax.random.split(key, 7)
    c = jax.random.normal(kc, (HID, B), jnp.float32)
    h = jax.random.normal(kh, (HID, B), jnp.float32)
    h_bottom = jax.random.normal(khb, (BOTTOM, B), jnp.float32)
    h_top = jax.random.normal(kht, (TOP, B), jnp.float32)
    z = jax.random.uniform(kz, (1, B), jnp.float32)
    z_bottom = jax.random.uniform(kzb, (1, B), jnp.float32)

    for last_layer in (False, True):
        raw, fused, key = make_scd_params(key, BOTTOM, HID, TOP, last_layer)
        h_new, c_new, z_new = scd_cell_forward(
            fused, c, h_bottom, h, h_top, z, z_bottom,
            hidden_size=HID, top_size=TOP, a=A, last_layer=last_layer)
        jax.block_until_ready((h_new, c_new, z_new))

        assert h_new.shape == (HID, B)
        assert c_new.shape == (HID, B)
        assert z_new.shape == (1, B)

        r_h, r_c, r_z = _ref_scd_cell(raw, c, h_bottom, h, h_top, z, z_bottom,
                                      hidden_size=HID, a=A, last_layer=last_layer)
        assert jnp.allclose(h_new, r_h, atol=5e-5, rtol=5e-5)
        assert jnp.allclose(c_new, r_c, atol=5e-5, rtol=5e-5)
        assert jnp.allclose(z_new, r_z, atol=5e-5, rtol=5e-5)

    print("KERNEL_OK")
</pallas_src>

<mosaic_0001>
module attributes {stable_mosaic.version = 11 : i64} {
  func.func @_scd_cell_kernel(%arg0: memref<2x80xf32, #tpu.memory_space<vmem>>, %arg1: memref<2x32xf32, #tpu.memory_space<vmem>>, %arg2: memref<2x1xf32, #tpu.memory_space<vmem>>, %arg3: memref<2x1xf32, #tpu.memory_space<vmem>>, %arg4: memref<80x129xf32, #tpu.memory_space<vmem>>, %arg5: memref<1x129xf32, #tpu.memory_space<vmem>>, %arg6: memref<2x64xf32, #tpu.memory_space<vmem>>, %arg7: memref<2x1xf32, #tpu.memory_space<vmem>>) attributes {dimension_semantics = [], scalar_prefetch = 0 : i64, scratch_operands = 0 : i64, tpu.core_type = #tpu.core_type<tc>} {
    %c0 = arith.constant 0 : index
    %c0_0 = arith.constant 0 : index
    %0 = vector.load %arg0[%c0, %c0_0] : memref<2x80xf32, #tpu.memory_space<vmem>>, vector<2x80xf32>
    %c0_1 = arith.constant 0 : index
    %c0_2 = arith.constant 0 : index
    %1 = vector.load %arg1[%c0_1, %c0_2] : memref<2x32xf32, #tpu.memory_space<vmem>>, vector<2x32xf32>
    %c0_3 = arith.constant 0 : index
    %c0_4 = arith.constant 0 : index
    %2 = vector.load %arg2[%c0_3, %c0_4] : memref<2x1xf32, #tpu.memory_space<vmem>>, vector<2x1xf32>
    %c0_5 = arith.constant 0 : index
    %c0_6 = arith.constant 0 : index
    %3 = vector.load %arg3[%c0_5, %c0_6] : memref<2x1xf32, #tpu.memory_space<vmem>>, vector<2x1xf32>
    %4 = vector.extract_strided_slice %0 {offsets = [0, 0], sizes = [2, 32], strides = [1, 1]} : vector<2x80xf32> to vector<2x32xf32>
    %5 = tpu.iota {dimensions = array<i32: 1>} : vector<1x80xi32>
    %c32_i32 = arith.constant 32 : i32
    %6 = vector.broadcast %c32_i32 : i32 to vector<1x80xi32>
    %7 = arith.cmpi slt, %5, %6 : vector<1x80xi32>
    %cst = arith.constant 1.000000e+00 : f32
    %8 = vector.broadcast %cst : f32 to vector<2x1xf32>
    %9 = arith.subf %8, %2 : vector<2x1xf32>
    %c64_i32 = arith.constant 64 : i32
    %10 = vector.broadcast %c64_i32 : i32 to vector<1x80xi32>
    %11 = arith.cmpi slt, %5, %10 : vector<1x80xi32>
    %12 = vector.shape_cast %11 : vector<1x80xi1> to vector<1x80xi1>
    %13 = vector.broadcast %12 : vector<1x80xi1> to vector<2x80xi1>
    %14 = vector.shape_cast %2 : vector<2x1xf32> to vector<2x1xf32>
    %15 = vector.broadcast %14 : vector<2x1xf32> to vector<2x80xf32>
    %16 = vector.shape_cast %3 : vector<2x1xf32> to vector<2x1xf32>
    %17 = vector.broadcast %16 : vector<2x1xf32> to vector<2x80xf32>
    %18 = arith.select %13, %15, %17 : vector<2x80xi1>, vector<2x80xf32>
    %19 = vector.shape_cast %7 : vector<1x80xi1> to vector<1x80xi1>
    %20 = vector.broadcast %19 : vector<1x80xi1> to vector<2x80xi1>
    %21 = vector.shape_cast %9 : vector<2x1xf32> to vector<2x1xf32>
    %22 = vector.broadcast %21 : vector<2x1xf32> to vector<2x80xf32>
    %23 = arith.select %20, %22, %18 : vector<2x80xi1>, vector<2x80xf32>
    %24 = arith.mulf %0, %23 : vector<2x80xf32>
    %c0_7 = arith.constant 0 : index
    %c0_8 = arith.constant 0 : index
    %25 = vector.load %arg4[%c0_7, %c0_8] : memref<80x129xf32, #tpu.memory_space<vmem>>, vector<80x129xf32>
    %cst_9 = arith.constant dense<0.000000e+00> : vector<2x129xf32>
    %26 = tpu.matmul %24, %25, %cst_9 {dimension_numbers = #tpu.dot_dimension_numbers<[1], [0], [0], [1], [0, 0, 1, 1], [], []>} : vector<2x80xf32>, vector<80x129xf32>, vector<2x129xf32> -> vector<2x129xf32>
    %c0_10 = arith.constant 0 : index
    %c0_11 = arith.constant 0 : index
    %27 = vector.load %arg5[%c0_10, %c0_11] : memref<1x129xf32, #tpu.memory_space<vmem>>, vector<1x129xf32>
    %28 = vector.broadcast %27 : vector<1x129xf32> to vector<2x129xf32>
    %29 = arith.addf %26, %28 : vector<2x129xf32>
    %30 = vector.extract_strided_slice %29 {offsets = [0, 0], sizes = [2, 96], strides = [1, 1]} : vector<2x129xf32> to vector<2x96xf32>
    %31 = arith.negf %30 : vector<2x96xf32>
    %32 = math.exp %31 : vector<2x96xf32>
    %cst_12 = arith.constant 1.000000e+00 : f32
    %33 = vector.broadcast %cst_12 : f32 to vector<2x96xf32>
    %34 = arith.addf %33, %32 : vector<2x96xf32>
    %35 = arith.divf %33, %34 : vector<2x96xf32>
    %36 = vector.extract_strided_slice %35 {offsets = [0, 0], sizes = [2, 32], strides = [1, 1]} : vector<2x96xf32> to vector<2x32xf32>
    %37 = vector.extract_strided_slice %35 {offsets = [0, 32], sizes = [2, 32], strides = [1, 1]} : vector<2x96xf32> to vector<2x32xf32>
    %38 = vector.extract_strided_slice %35 {offsets = [0, 64], sizes = [2, 32], strides = [1, 1]} : vector<2x96xf32> to vector<2x32xf32>
    %39 = vector.extract_strided_slice %29 {offsets = [0, 96], sizes = [2, 32], strides = [1, 1]} : vector<2x129xf32> to vector<2x32xf32>
    %40 = math.tanh %39 : vector<2x32xf32>
    %41 = vector.extract_strided_slice %29 {offsets = [0, 128], sizes = [2, 1], strides = [1, 1]} : vector<2x129xf32> to vector<2x1xf32>
    %cst_13 = arith.constant 1.000000e+00 : f32
    %42 = vector.broadcast %cst_13 : f32 to vector<2x1xf32>
    %43 = arith.mulf %42, %41 : vector<2x1xf32>
    %cst_14 = arith.constant 1.000000e+00 : f32
    %44 = vector.broadcast %cst_14 : f32 to vector<2x1xf32>
    %45 = arith.addf %43, %44 : vector<2x1xf32>
    %cst_15 = arith.constant 5.000000e-01 : f32
    %46 = vector.broadcast %cst_15 : f32 to vector<2x1xf32>
    %47 = arith.mulf %45, %46 : vector<2x1xf32>
    %cst_16 = arith.constant 0.000000e+00 : f32
    %cst_17 = arith.constant 1.000000e+00 : f32
    %48 = vector.broadcast %cst_16 : f32 to vector<2x1xf32>
    %49 = arith.maximumf %48, %47 : vector<2x1xf32>
    %50 = vector.broadcast %cst_17 : f32 to vector<2x1xf32>
    %51 = arith.minimumf %50, %49 : vector<2x1xf32>
    %cst_18 = arith.constant 1.000000e+00 : f32
    %52 = vector.broadcast %cst_18 : f32 to vector<2x1xf32>
    %53 = arith.subf %52, %2 : vector<2x1xf32>
    %cst_19 = arith.constant 1.000000e+00 : f32
    %54 = vector.broadcast %cst_19 : f32 to vector<2x1xf32>
    %55 = arith.subf %54, %3 : vector<2x1xf32>
    %56 = arith.mulf %53, %55 : vector<2x1xf32>
    %cst_20 = arith.constant 1.000000e+00 : f32
    %57 = vector.broadcast %cst_20 : f32 to vector<2x1xf32>
    %58 = arith.subf %57, %2 : vector<2x1xf32>
    %59 = arith.mulf %58, %3 : vector<2x1xf32>
    %60 = arith.mulf %37, %40 : vector<2x32xf32>
    %61 = vector.broadcast %2 : vector<2x1xf32> to vector<2x32xf32>
    %62 = arith.mulf %61, %60 : vector<2x32xf32>
    %63 = vector.broadcast %56 : vector<2x1xf32> to vector<2x32xf32>
    %64 = arith.mulf %63, %1 : vector<2x32xf32>
    %65 = arith.addf %62, %64 : vector<2x32xf32>
    %66 = arith.mulf %36, %1 : vector<2x32xf32>
    %67 = arith.addf %66, %60 : vector<2x32xf32>
    %68 = vector.broadcast %59 : vector<2x1xf32> to vector<2x32xf32>
    %69 = arith.mulf %68, %67 : vector<2x32xf32>
    %70 = arith.addf %65, %69 : vector<2x32xf32>
    %71 = math.tanh %70 : vector<2x32xf32>
    %72 = arith.mulf %38, %71 : vector<2x32xf32>
    %73 = vector.broadcast %2 : vector<2x1xf32> to vector<2x32xf32>
    %74 = arith.mulf %73, %72 : vector<2x32xf32>
    %75 = vector.broadcast %56 : vector<2x1xf32> to vector<2x32xf32>
    %76 = arith.mulf %75, %4 : vector<2x32xf32>
    %77 = arith.addf %74, %76 : vector<2x32xf32>
    %78 = vector.broadcast %59 : vector<2x1xf32> to vector<2x32xf32>
    %79 = arith.mulf %78, %72 : vector<2x32xf32>
    %80 = arith.addf %77, %79 : vector<2x32xf32>
    %c0_21 = arith.constant 0 : index
    %c0_22 = arith.constant 0 : index
    %81 = vector.load %arg6[%c0_21, %c0_22] : memref<2x64xf32, #tpu.memory_space<vmem>>, vector<2x32xf32>
    tpu.vector_store %arg6[%c0_21, %c0_22], %80 {strides = array<i32>} : memref<2x64xf32, #tpu.memory_space<vmem>>, vector<2x32xf32>,
    %c0_23 = arith.constant 0 : index
    %c32 = arith.constant 32 : index
    %82 = vector.load %arg6[%c0_23, %c32] : memref<2x64xf32, #tpu.memory_space<vmem>>, vector<2x32xf32>
    tpu.vector_store %arg6[%c0_23, %c32], %70 {strides = array<i32>} : memref<2x64xf32, #tpu.memory_space<vmem>>, vector<2x32xf32>,
    %c0_24 = arith.constant 0 : index
    %c0_25 = arith.constant 0 : index
    %83 = vector.load %arg7[%c0_24, %c0_25] : memref<2x1xf32, #tpu.memory_space<vmem>>, vector<2x1xf32>
    tpu.vector_store %arg7[%c0_24, %c0_25], %51 {strides = array<i32>} : memref<2x1xf32, #tpu.memory_space<vmem>>, vector<2x1xf32>,
    return
  }
}

</mosaic_0001>

<llo_original>
// kernel: scd_cell_forward.1
$region0: #{scd_cell_forward.1}
  #allocation0 [shape = 'u32[]', space=smem, size = 0x4, offset = 0x4, fixed_abs, tag = 'smem constant byte address 0x4 - core index']
  #allocation1 [shape = 'u32[144,128]{1,0:T(1,128)}', space=vmem, size = 0x12000, scoped, tag = 'internal scratch']
  %s0 = inlined_call_operand.vmem [shape: f32[2,80], index: 0, kind: input, shape index: {}]
  %s1 = inlined_call_operand.vmem [shape: f32[2,32], index: 1, kind: input, shape index: {}]
  %s2 = inlined_call_operand.vmem [shape: f32[2,1], index: 2, kind: input, shape index: {}]
  %s3 = inlined_call_operand.vmem [shape: f32[2,1], index: 3, kind: input, shape index: {}]
  %s4 = inlined_call_operand.vmem [shape: f32[80,129], index: 4, kind: input, shape index: {}]
  %s5 = inlined_call_operand.vmem [shape: f32[1,129], index: 5, kind: input, shape index: {}]
  %s6 = inlined_call_operand.vmem [shape: f32[2,64], index: 6, kind: output, shape index: {0}]
  %s7 = inlined_call_operand.vmem [shape: f32[2,1], index: 7, kind: output, shape index: {1}]
  %8 = xla_tuple %s6, %s7
  %s9 = sld [smem:[#allocation0]]
  $region42: #{scd_cell_forward.1} parent=0
    _
  %s11 = ssub.s32 1, %s9
  %s12 = scalar_select 0, %s11, %s9
  // Predicated region
  $region2: #{scd_cell_forward.1} parent=0 // pred_check
    _
  $region3: #{scd_cell_forward.1} parent=0 // pred_check_branch
    %14 = sbr.rel (0) target = $region5
  $region4: #{scd_cell_forward.1} parent=0 // pred_region
    _
  $region5: #{scd_cell_forward.1} parent=0 // pred_fallthru
    _
  // Predicated region
  $region6: #{scd_cell_forward.1} parent=0 // pred_check
    _
  $region7: #{scd_cell_forward.1} parent=0 // pred_check_branch
    %16 = sbr.rel (0) target = $region9
  $region8: #{scd_cell_forward.1} parent=0 // pred_region
    _
  $region9: #{scd_cell_forward.1} parent=0 // pred_fallthru
    _
  // Predicated region
  $region10: #{scd_cell_forward.1} parent=0 // pred_check
    _
  $region11: #{scd_cell_forward.1} parent=0 // pred_check_branch
    %18 = sbr.rel (0) target = $region13
  $region12: #{scd_cell_forward.1} parent=0 // pred_region
    _
  $region13: #{scd_cell_forward.1} parent=0 // pred_fallthru
    _
  // Predicated region
  $region14: #{scd_cell_forward.1} parent=0 // pred_check
    _
  $region15: #{scd_cell_forward.1} parent=0 // pred_check_branch
    %20 = sbr.rel (0) target = $region17
  $region16: #{scd_cell_forward.1} parent=0 // pred_region
    _
  $region17: #{scd_cell_forward.1} parent=0 // pred_fallthru
    _
  // Predicated region
  $region18: #{scd_cell_forward.1} parent=0 // pred_check
    _
  $region19: #{scd_cell_forward.1} parent=0 // pred_check_branch
    %22 = sbr.rel (0) target = $region21
  $region20: #{scd_cell_forward.1} parent=0 // pred_region
    _
  $region21: #{scd_cell_forward.1} parent=0 // pred_fallthru
    _
  // Predicated region
  $region22: #{scd_cell_forward.1} parent=0 // pred_check
    _
  $region23: #{scd_cell_forward.1} parent=0 // pred_check_branch
    %24 = sbr.rel (0) target = $region25
  $region24: #{scd_cell_forward.1} parent=0 // pred_region
    _
  $region25: #{scd_cell_forward.1} parent=0 // pred_fallthru
    _
  %v25 = vld [vmem:[%s0] sm:$0x3]
  %v26 = vld [vmem:[%s1] sm:$0x3]
  %v27 = vld [vmem:[%s2] sm:$0x3]
  %v28 = vld [vmem:[%s3] sm:$0x3]
  %v29 = vlaneseq
  %v30 = vand.u32 %v29, 127
  %vm31 = vcmp.lt.s32.totalorder %v30, 32
  %v32 = vsub.f32 1.0, %v27
  %vm33 = vcmp.lt.s32.totalorder %v30, 64
  %v34 = vsel %vm33, 1, 0
  %vm35 = vcmp.eq.s32.totalorder %v34, 1
  %37 = vset.pattern.permute.xlu0 0
  %38 = vperm.xlu0 %37, %v27
  %v39 = vpop.permute.xlu0 %38
  %42 = vset.pattern.permute.xlu0 0
  %43 = vperm.xlu0 %42, %v28
  %v44 = vpop.permute.xlu0 %43
  %v46 = vsel %vm35, %v39, %v44
  %v47 = vsel %vm31, 1, 0
  %vm48 = vcmp.eq.s32.totalorder %v47, 1
  %50 = vset.pattern.permute.xlu0 0
  %51 = vperm.xlu0 %50, %v32
  %v52 = vpop.permute.xlu0 %51
  %v54 = vsel %vm48, %v52, %v46
  %v55 = vmul.f32 %v25, %v54
  %v56 = vld [vmem:[%s4] sm:$0xff]
  %v57 = vld [vmem:[%s4 + $0x8] sm:$0xff]
  %v58 = vld [vmem:[%s4 + $0x10] sm:$0xff]
  %v59 = vld [vmem:[%s4 + $0x18] sm:$0xff]
  %v60 = vld [vmem:[%s4 + $0x20] sm:$0xff]
  %v61 = vld [vmem:[%s4 + $0x28] sm:$0xff]
  %v62 = vld [vmem:[%s4 + $0x30] sm:$0xff]
  %v63 = vld [vmem:[%s4 + $0x38] sm:$0xff]
  %v64 = vld [vmem:[%s4 + $0x40] sm:$0xff]
  %v65 = vld [vmem:[%s4 + $0x48] sm:$0xff]
  %v66 = vld [vmem:[%s4 + $0x50] sm:$0xff]
  %v67 = vld [vmem:[%s4 + $0x58] sm:$0xff]
  %v68 = vld [vmem:[%s4 + $0x60] sm:$0xff]
  %v69 = vld [vmem:[%s4 + $0x68] sm:$0xff]
  %v70 = vld [vmem:[%s4 + $0x70] sm:$0xff]
  %v71 = vld [vmem:[%s4 + $0x78] sm:$0xff]
  %v72 = vld [vmem:[%s4 + $0x80] sm:$0xff]
  %v73 = vld [vmem:[%s4 + $0x88] sm:$0xff]
  %v74 = vld [vmem:[%s4 + $0x90] sm:$0xff]
  %v75 = vld [vmem:[%s4 + $0x98] sm:$0xff]
  %v76 = vld [vmem:[%s5] sm:$0x3]
  %v78 = vlaneseq
  %v79 = vshrl.u32 %v78, 7
  %v80 = vsub.s32 0, %v79
  %v81 = vrot.slane %v76, %v80
  %v82 = vlaneseq
  %v83 = vshrl.u32 %v82, 7
  %v84 = vsub.s32 1, %v83
  %v85 = vrot.slane %v76, %v84
  %vm88 = vcmask 654336
  %v90 = vsel %vm88, %v55, 0
  %92 = vmatprep.subr.mxu0 0.0
  %93 = vmatpush1.msra.mxu0 0.0
  %94 = vmatprep.subr.mxu0 0.0
  %95 = vmatpush1.msra.mxu0 0.0
  %96 = vmatprep.subr.mxu0 0.0
  %97 = vmatpush1.msra.mxu0 0.0
  %98 = vmatprep.subr.mxu0 0.0
  %99 = vmatpush1.msra.mxu0 0.0
  %100 = vmatprep.subr.mxu0 0.0
  %101 = vmatpush1.msra.mxu0 0.0
  %102 = vmatprep.subr.mxu0 0.0
  %103 = vmatpush1.msra.mxu0 0.0
  %104 = vmatprep.subr.mxu0 %v75
  %105 = vmatpush1.msra.mxu0 %v74
  %106 = vmatprep.subr.mxu0 %v73
  %107 = vmatpush1.msra.mxu0 %v72
  %108 = vmatprep.subr.mxu0 %v71
  %109 = vmatpush1.msra.mxu0 %v70
  %110 = vmatprep.subr.mxu0 %v69
  %111 = vmatpush1.msra.mxu0 %v68
  %112 = vmatprep.subr.mxu0 %v67
  %113 = vmatpush1.msra.mxu0 %v66
  %114 = vmatprep.subr.mxu0 %v65
  %115 = vmatpush1.msra.mxu0 %v64
  %116 = vmatprep.subr.mxu0 %v63
  %117 = vmatpush1.msra.mxu0 %v62
  %118 = vmatprep.subr.mxu0 %v61
  %119 = vmatpush1.msra.mxu0 %v60
  %120 = vmatprep.subr.mxu0 %v59
  %121 = vmatpush1.msra.mxu0 %v58
  %122 = vmatprep.subr.mxu0 %v57
  %123 = vmatpush1.msra.mxu0 %v56
  %124 = vmatprep.subr.mxu0 0.0
  %125 = vmatpush2.msra.mxu0 0.0
  %126 = vmatprep.subr.mxu0 0.0
  %127 = vmatpush2.msra.mxu0 0.0
  %128 = vmatprep.subr.mxu0 0.0
  %129 = vmatpush2.msra.mxu0 0.0
  %130 = vmatprep.subr.mxu0 0.0
  %131 = vmatpush2.msra.mxu0 0.0
  %132 = vmatprep.subr.mxu0 0.0
  %133 = vmatpush2.msra.mxu0 0.0
  %134 = vmatprep.subr.mxu0 0.0
  %135 = vmatpush2.msra.mxu0 0.0
  %136 = vmatprep.subr.mxu0 0.0
  %137 = vmatpush2.msra.mxu0 0.0
  %138 = vmatprep.subr.mxu0 0.0
  %139 = vmatpush2.msra.mxu0 0.0
  %140 = vmatprep.subr.mxu0 0.0
  %141 = vmatpush2.msra.mxu0 0.0
  %142 = vmatprep.subr.mxu0 0.0
  %143 = vmatpush2.msra.mxu0 0.0
  %144 = vmatprep.subr.mxu0 0.0
  %145 = vmatpush2.msra.mxu0 0.0
  %146 = vmatprep.subr.mxu0 0.0
  %147 = vmatpush2.msra.mxu0 0.0
  %148 = vmatprep.subr.mxu0 0.0
  %149 = vmatpush2.msra.mxu0 0.0
  %150 = vmatprep.subr.mxu0 0.0
  %151 = vmatpush2.msra.mxu0 0.0
  %152 = vmatprep.subr.mxu0 0.0
  %153 = vmatpush2.msra.mxu0 0.0
  %154 = vmatprep.subr.mxu0 0.0
  %155 = vmatpush2.msra.mxu0 0.0
  %156 = vmatprep.mubr.f32.mxu0 0.0
  %157 = vmatmul.mubr.f32.gmra.mxu0 %v90
  %v158 = vpop.f32.mrf.mxu0
  %v159 = vadd.f32 %v81, %v158
  %v160 = vpop.f32.mrf.mxu0
  %v161 = vadd.f32 %v85, %v160
  %162 = vdwg.mxu0
  %v163 = vxor.u32 %v159, 2147483648
  %v164 = vmul.f32 %v163, 1.442695
  %v165 = vpow.pop %v164
  %v166 = vadd.f32 %v165, 1.0
  %v167 = vrcp.pop %v166
  %v168 = vmul.f32 1.0, %v167
  %v169 = vtanh.pop %v159
  %v170 = vadd.f32 %v161, 1.0
  %v171 = vmul.f32 %v170, 0.5
  %v172 = vmax.f32 %v171, 0.0
  %v173 = vmin.f32 %v172, 1.0
  %v174 = vsub.f32 1.0, %v28
  %v175 = vmul.f32 %v32, %v174
  %v176 = vmul.f32 %v32, %v28
  %178 = vrot.lane.b32.xlu0 %v169, 64
  %v179 = vpop.permute.xlu0 %178
  %v181 = vmul.f32 %v168, %v179
  %v182 = vmul.f32 %v39, %v181
  %184 = vset.pattern.permute.xlu0 0
  %185 = vperm.xlu0 %184, %v175
  %v186 = vpop.permute.xlu0 %185
  %v188 = vmul.f32 %v186, %v26
  %190 = vrot.lane.b32.xlu0 %v188, 32
  %v191 = vpop.permute.xlu0 %190
  %v193 = vadd.f32 %v182, %v191
  %v194 = vmul.f32 %v168, %v26
  %196 = vrot.lane.b32.xlu0 %v181, 96
  %v197 = vpop.permute.xlu0 %196
  %v199 = vadd.f32 %v194, %v197
  %201 = vset.pattern.permute.xlu0 0
  %202 = vperm.xlu0 %201, %v176
  %v203 = vpop.permute.xlu0 %202
  %v205 = vmul.f32 %v203, %v199
  %207 = vrot.lane.b32.xlu0 %v205, 32
  %v208 = vpop.permute.xlu0 %207
  %v210 = vadd.f32 %v193, %v208
  %v211 = vtanh.pop %v210
  %213 = vrot.lane.b32.xlu0 %v211, 32
  %v214 = vpop.permute.xlu0 %213
  %v216 = vmul.f32 %v168, %v214
  %v217 = vmul.f32 %v39, %v216
  %v218 = vmul.f32 %v186, %v25
  %220 = vrot.lane.b32.xlu0 %v218, 64
  %v221 = vpop.permute.xlu0 %220
  %v223 = vadd.f32 %v217, %v221
  %v224 = vmul.f32 %v203, %v216
  %v225 = vadd.f32 %v223, %v224
  %227 = vrot.lane.b32.xlu0 %v225, 64
  %v228 = vpop.permute.xlu0 %227
  %vm230 = vcmask 254976
  %231 = vst.msk [vmem:[%s6] sm:$0x3] %vm230, %v228
  %vm232 = vcmask 517376
  %233 = vst.msk [vmem:[%s6] sm:$0x3] %vm232, %v210
  %vm234 = vcmask 1024
  %235 = vst.msk [vmem:[%s7] sm:$0x3] %vm234, %v173
  // Predicated region
  $region26: #{scd_cell_forward.1} parent=0 // pred_check
    _
  $region27: #{scd_cell_forward.1} parent=0 // pred_check_branch
    %237 = sbr.rel (0) target = $region29
  $region28: #{scd_cell_forward.1} parent=0 // pred_region
    _
  $region29: #{scd_cell_forward.1} parent=0 // pred_fallthru
    _
  // Predicated region
  $region30: #{scd_cell_forward.1} parent=0 // pred_check
    _
  $region31: #{scd_cell_forward.1} parent=0 // pred_check_branch
    %239 = sbr.rel (0) target = $region33
  $region32: #{scd_cell_forward.1} parent=0 // pred_region
    _
  $region33: #{scd_cell_forward.1} parent=0 // pred_fallthru
    _
  // Predicated region
  $region34: #{scd_cell_forward.1} parent=0 // pred_check
    _
  $region35: #{scd_cell_forward.1} parent=0 // pred_check_branch
    %241 = sbr.rel (0) target = $region37
  $region36: #{scd_cell_forward.1} parent=0 // pred_region
    _
  $region37: #{scd_cell_forward.1} parent=0 // pred_fallthru
    _
  // Predicated region
  $region38: #{scd_cell_forward.1} parent=0 // pred_check
    _
  $region39: #{scd_cell_forward.1} parent=0 // pred_check_branch
    %243 = sbr.rel (0) target = $region41
  $region40: #{scd_cell_forward.1} parent=0 // pred_region
    _
  $region41: #{scd_cell_forward.1} parent=0 // pred_fallthru
    _

</llo_original>
